<compile_context>
chip_gen: v7x
topology: tpu7x:2x2x1
jax: 0.10.0
libtpu: 0.0.40
codegen_flags: <defaults>
</compile_context>

<pallas_src>
import functools

import jax
import jax.numpy as jnp
from jax.experimental import pallas as pl
from jax.experimental.pallas import tpu as pltpu


def _round_up(x, m):
    return ((x + m - 1) // m) * m


def _snnl_kernel(q_ref, k_ref, rlab_ref, clab_ref, out_ref, acc_a, acc_s,
                 *, inv_t, n_valid):
    # program_id / num_programs must be read at the kernel's top level
    # (NOT inside a pl.when body) so interpret mode can substitute them.
    i = pl.program_id(0)
    j = pl.program_id(1)
    last_j = pl.num_programs(1) - 1

    @pl.when(j == 0)
    def _():
        acc_a[...] = jnp.zeros_like(acc_a)
        acc_s[...] = jnp.zeros_like(acc_s)

    # (tm, tn) cosine-similarity tile on the MXU: bf16 inputs, f32 accumulation.
    sim = jax.lax.dot_general(
        q_ref[...], k_ref[...], (((1,), (1,)), ((), ())),
        preferred_element_type=jnp.float32,
    )
    tm, tn = sim.shape

    # Fused exp((sim - 1) / T); the "1 -" of the cosine distance folds in here.
    negexpd = jnp.exp((sim - 1.0) * inv_t)

    # Global row / column indices of this tile (cheap VPU iota + compares).
    row = jax.lax.broadcasted_iota(jnp.int32, (tm, 1), 0) + i * tm
    col = jax.lax.broadcasted_iota(jnp.int32, (1, tn), 1) + j * tn

    col_valid = col < n_valid                    # mask padded key columns
    not_diag = row != col                        # dmask of the reference
    label_eq = rlab_ref[...] == clab_ref[...]    # same-class mask (incl. diag)

    nv = jnp.where(col_valid, negexpd, 0.0)
    acc_a[...] += jnp.sum(jnp.where(not_diag, nv, 0.0), axis=1, keepdims=True)
    acc_s[...] += jnp.sum(jnp.where(label_eq, nv, 0.0), axis=1, keepdims=True)

    @pl.when(j == last_j)
    def _():
        row_valid = row < n_valid
        log_ratio = jnp.log(acc_s[...] + 1e-9) - jnp.log(acc_a[...])
        out_ref[...] = jnp.where(row_valid, log_ratio, 0.0)


@functools.partial(jax.jit, static_argnames=("temperature",))
def soft_nearest_neighbor_loss(embeddings, labels, temperature=1.0):
    """embeddings: (N, D) float; labels: (N,) int.  Returns scalar float32."""
    n, d = embeddings.shape

    # --- prologue (XLA): normalize once, matching F.normalize(dim=1, eps=1e-12)
    x = embeddings.astype(jnp.float32)
    sumsq = jnp.sum(x * x, axis=1, keepdims=True)
    xn = x * jax.lax.rsqrt(jnp.maximum(sumsq, 1e-24))

    # --- tile sizes: MXU-aligned (multiples of 128), small VMEM footprint
    n_align = _round_up(n, 128)
    if n_align >= 512:
        tm, tn = 256, 512
        n_pad = _round_up(n, 512)
    else:
        tm = tn = n_align
        n_pad = n_align
    d_pad = _round_up(d, 128)

    # bf16 MXU inputs (f32 accumulation in-kernel); zero padding is inert.
    xn_b = jnp.pad(xn.astype(jnp.bfloat16), ((0, n_pad - n), (0, d_pad - d)))
    lab = jnp.pad(labels.astype(jnp.int32), (0, n_pad - n))
    rlab = lab.reshape(n_pad, 1)
    clab = lab.reshape(1, n_pad)

    kernel = functools.partial(
        _snnl_kernel, inv_t=1.0 / float(temperature), n_valid=n)

    grid = (n_pad // tm, n_pad // tn)
    out = pl.pallas_call(
        kernel,
        out_shape=jax.ShapeDtypeStruct((n_pad, 1), jnp.float32),
        grid_spec=pltpu.PrefetchScalarGridSpec(
            num_scalar_prefetch=0,
            grid=grid,
            in_specs=[
                pl.BlockSpec((tm, d_pad), lambda i, j: (i, 0)),   # query rows
                pl.BlockSpec((tn, d_pad), lambda i, j: (j, 0)),   # key rows
                pl.BlockSpec((tm, 1), lambda i, j: (i, 0)),       # row labels
                pl.BlockSpec((1, tn), lambda i, j: (0, j)),       # col labels
            ],
            out_specs=pl.BlockSpec((tm, 1), lambda i, j: (i, 0)),
            scratch_shapes=[
                pltpu.VMEM((tm, 1), jnp.float32),   # alcn accumulator
                pltpu.VMEM((tm, 1), jnp.float32),   # sacn accumulator
            ],
        ),
        compiler_params=pltpu.CompilerParams(
            dimension_semantics=("parallel", "arbitrary"),
        ),
    )(xn_b, xn_b, rlab, clab)

    # Tiny epilogue: -mean over the true N rows (padded rows wrote 0).
    return -jnp.sum(out[:, 0]) / n


def _reference(embeddings, labels, temperature=1.0):
    eps = 1e-9
    x = embeddings.astype(jnp.float32)
    xn = x / jnp.maximum(jnp.linalg.norm(x, axis=1, keepdims=True), 1e-12)
    dist = (1.0 - xn @ xn.T) / temperature
    negexpd = jnp.exp(-dist)
    mask = (labels[:, None] == labels[None, :]).astype(jnp.float32)
    dmask = 1.0 - jnp.eye(labels.shape[0], dtype=jnp.float32)
    alcn = jnp.sum(negexpd * dmask, axis=1)
    sacn = jnp.sum(negexpd * mask, axis=1)
    return -jnp.mean(jnp.log((sacn + eps) / alcn))


if __name__ == "__main__":
    key = jax.random.PRNGKey(0)

    # Case 1: small shape from the module spec.
    k_emb, k_lab, key = jax.random.split(key, 3)
    N, D = 8, 32
    embeddings = jax.random.normal(k_emb, (N, D), dtype=jnp.float32)
    labels = jax.random.randint(k_lab, (N,), 0, 3, dtype=jnp.int32)

    loss = jax.block_until_ready(
        soft_nearest_neighbor_loss(embeddings, labels, temperature=1.0))
    ref = _reference(embeddings, labels, temperature=1.0)
    # bf16 MXU inputs -> ~1e-3 relative similarity error; relaxed tolerance.
    assert jnp.allclose(loss, ref, atol=2e-2, rtol=2e-2), (loss, ref)

    # Case 2: exercises multi-block grid, padding and streaming accumulation.
    k_emb2, k_lab2, key = jax.random.split(key, 3)
    N2, D2 = 600, 48
    emb2 = jax.random.normal(k_emb2, (N2, D2), dtype=jnp.float32)
    lab2 = jax.random.randint(k_lab2, (N2,), 0, 10, dtype=jnp.int32)

    loss2 = jax.block_until_ready(
        soft_nearest_neighbor_loss(emb2, lab2, temperature=0.5))
    ref2 = _reference(emb2, lab2, temperature=0.5)
    assert jnp.allclose(loss2, ref2, atol=2e-2, rtol=2e-2), (loss2, ref2)

    print("KERNEL_OK")
</pallas_src>

<mosaic_0001>
module attributes {stable_mosaic.version = 11 : i64} {
  func.func @_snnl_kernel(%arg0: i32, %arg1: i32, %arg2: memref<128x128xbf16, #tpu.memory_space<vmem>>, %arg3: memref<128x128xbf16, #tpu.memory_space<vmem>>, %arg4: memref<128x1xi32, #tpu.memory_space<vmem>>, %arg5: memref<1x128xi32, #tpu.memory_space<vmem>>, %arg6: memref<128x1xf32, #tpu.memory_space<vmem>>, %arg7: memref<128x1xf32, #tpu.memory_space<vmem>>, %arg8: memref<128x1xf32, #tpu.memory_space<vmem>>) attributes {dimension_semantics = [#tpu.dimension_semantics<parallel>, #tpu.dimension_semantics<arbitrary>], iteration_bounds = array<i64: 1, 1>, scalar_prefetch = 0 : i64, scratch_operands = 2 : i64, tpu.core_type = #tpu.core_type<tc>, window_params = [{transform_indices = @transform_0, window_bounds = array<i64: 128, 128>}, {transform_indices = @transform_1, window_bounds = array<i64: 128, 128>}, {transform_indices = @transform_2, window_bounds = array<i64: 128, 1>}, {transform_indices = @transform_3, window_bounds = array<i64: 1, 128>}, {transform_indices = @transform_4, window_bounds = array<i64: 128, 1>}]} {
    %c0_i32 = arith.constant 0 : i32
    %0 = arith.cmpi eq, %arg1, %c0_i32 : i32
    %1 = arith.extui %0 : i1 to i32
    %c0_i32_0 = arith.constant 0 : i32
    %2 = arith.cmpi ne, %1, %c0_i32_0 : i32
    scf.if %2 {
      %cst_26 = arith.constant 0.000000e+00 : f32
      %50 = vector.broadcast %cst_26 : f32 to vector<128x1xf32>
      %c0_27 = arith.constant 0 : index
      %c0_28 = arith.constant 0 : index
      %51 = vector.load %arg7[%c0_27, %c0_28] : memref<128x1xf32, #tpu.memory_space<vmem>>, vector<128x1xf32>
      tpu.vector_store %arg7[%c0_27, %c0_28], %50 {strides = array<i32>} : memref<128x1xf32, #tpu.memory_space<vmem>>, vector<128x1xf32>,
      %cst_29 = arith.constant 0.000000e+00 : f32
      %52 = vector.broadcast %cst_29 : f32 to vector<128x1xf32>
      %c0_30 = arith.constant 0 : index
      %c0_31 = arith.constant 0 : index
      %53 = vector.load %arg8[%c0_30, %c0_31] : memref<128x1xf32, #tpu.memory_space<vmem>>, vector<128x1xf32>
      tpu.vector_store %arg8[%c0_30, %c0_31], %52 {strides = array<i32>} : memref<128x1xf32, #tpu.memory_space<vmem>>, vector<128x1xf32>,
    } else {
    }
    %c0 = arith.constant 0 : index
    %c0_1 = arith.constant 0 : index
    %3 = vector.load %arg2[%c0, %c0_1] : memref<128x128xbf16, #tpu.memory_space<vmem>>, vector<128x128xbf16>
    %c0_2 = arith.constant 0 : index
    %c0_3 = arith.constant 0 : index
    %4 = vector.load %arg3[%c0_2, %c0_3] : memref<128x128xbf16, #tpu.memory_space<vmem>>, vector<128x128xbf16>
    %cst = arith.constant dense<0.000000e+00> : vector<128x128xf32>
    %5 = tpu.matmul %3, %4, %cst {dimension_numbers = #tpu.dot_dimension_numbers<[1], [1], [0], [0], [0, 0, 1, 0], [], []>} : vector<128x128xbf16>, vector<128x128xbf16>, vector<128x128xf32> -> vector<128x128xf32>
    %cst_4 = arith.constant 1.000000e+00 : f32
    %6 = vector.broadcast %cst_4 : f32 to vector<128x128xf32>
    %7 = arith.subf %5, %6 : vector<128x128xf32>
    %cst_5 = arith.constant 1.000000e+00 : f32
    %8 = vector.broadcast %cst_5 : f32 to vector<128x128xf32>
    %9 = arith.mulf %7, %8 : vector<128x128xf32>
    %10 = math.exp %9 : vector<128x128xf32>
    %11 = tpu.iota {dimensions = array<i32: 0>} : vector<128x1xi32>
    %c128_i32 = arith.constant 128 : i32
    %12 = arith.muli %arg0, %c128_i32 : i32
    %13 = vector.broadcast %12 : i32 to vector<128x1xi32>
    %14 = arith.addi %11, %13 : vector<128x1xi32>
    %15 = tpu.iota {dimensions = array<i32: 1>} : vector<1x128xi32>
    %c128_i32_6 = arith.constant 128 : i32
    %16 = arith.muli %arg1, %c128_i32_6 : i32
    %17 = vector.broadcast %16 : i32 to vector<1x128xi32>
    %18 = arith.addi %15, %17 : vector<1x128xi32>
    %c8_i32 = arith.constant 8 : i32
    %19 = vector.broadcast %c8_i32 : i32 to vector<1x128xi32>
    %20 = arith.cmpi slt, %18, %19 : vector<1x128xi32>
    %21 = vector.broadcast %14 : vector<128x1xi32> to vector<128x128xi32>
    %22 = vector.broadcast %18 : vector<1x128xi32> to vector<128x128xi32>
    %23 = arith.cmpi ne, %21, %22 : vector<128x128xi32>
    %c0_7 = arith.constant 0 : index
    %c0_8 = arith.constant 0 : index
    %24 = vector.load %arg4[%c0_7, %c0_8] : memref<128x1xi32, #tpu.memory_space<vmem>>, vector<128x1xi32>
    %c0_9 = arith.constant 0 : index
    %c0_10 = arith.constant 0 : index
    %25 = vector.load %arg5[%c0_9, %c0_10] : memref<1x128xi32, #tpu.memory_space<vmem>>, vector<1x128xi32>
    %26 = vector.broadcast %24 : vector<128x1xi32> to vector<128x128xi32>
    %27 = vector.broadcast %25 : vector<1x128xi32> to vector<128x128xi32>
    %28 = arith.cmpi eq, %26, %27 : vector<128x128xi32>
    %cst_11 = arith.constant 0.000000e+00 : f32
    %29 = vector.shape_cast %20 : vector<1x128xi1> to vector<1x128xi1>
    %30 = vector.broadcast %29 : vector<1x128xi1> to vector<128x128xi1>
    %31 = vector.broadcast %cst_11 : f32 to vector<128x128xf32>
    %32 = arith.select %30, %10, %31 : vector<128x128xi1>, vector<128x128xf32>
    %c0_12 = arith.constant 0 : index
    %c0_13 = arith.constant 0 : index
    %33 = vector.load %arg7[%c0_12, %c0_13] : memref<128x1xf32, #tpu.memory_space<vmem>>, vector<128x1xf32>
    %cst_14 = arith.constant 0.000000e+00 : f32
    %34 = vector.broadcast %cst_14 : f32 to vector<128x128xf32>
    %35 = arith.select %23, %32, %34 : vector<128x128xi1>, vector<128x128xf32>
    %cst_15 = arith.constant dense<0.000000e+00> : vector<128xf32>
    %36 = vector.multi_reduction <add>, %35, %cst_15 [1] : vector<128x128xf32> to vector<128xf32>
    %37 = vector.shape_cast %36 : vector<128xf32> to vector<128x1xf32>
    %38 = arith.addf %33, %37 : vector<128x1xf32>
    %c0_16 = arith.constant 0 : index
    %c0_17 = arith.constant 0 : index
    %39 = vector.load %arg7[%c0_16, %c0_17] : memref<128x1xf32, #tpu.memory_space<vmem>>, vector<128x1xf32>
    tpu.vector_store %arg7[%c0_16, %c0_17], %38 {strides = array<i32>} : memref<128x1xf32, #tpu.memory_space<vmem>>, vector<128x1xf32>,
    %c0_18 = arith.constant 0 : index
    %c0_19 = arith.constant 0 : index
    %40 = vector.load %arg8[%c0_18, %c0_19] : memref<128x1xf32, #tpu.memory_space<vmem>>, vector<128x1xf32>
    %cst_20 = arith.constant 0.000000e+00 : f32
    %41 = vector.broadcast %cst_20 : f32 to vector<128x128xf32>
    %42 = arith.select %28, %32, %41 : vector<128x128xi1>, vector<128x128xf32>
    %cst_21 = arith.constant dense<0.000000e+00> : vector<128xf32>
    %43 = vector.multi_reduction <add>, %42, %cst_21 [1] : vector<128x128xf32> to vector<128xf32>
    %44 = vector.shape_cast %43 : vector<128xf32> to vector<128x1xf32>
    %45 = arith.addf %40, %44 : vector<128x1xf32>
    %c0_22 = arith.constant 0 : index
    %c0_23 = arith.constant 0 : index
    %46 = vector.load %arg8[%c0_22, %c0_23] : memref<128x1xf32, #tpu.memory_space<vmem>>, vector<128x1xf32>
    tpu.vector_store %arg8[%c0_22, %c0_23], %45 {strides = array<i32>} : memref<128x1xf32, #tpu.memory_space<vmem>>, vector<128x1xf32>,
    %c0_i32_24 = arith.constant 0 : i32
    %47 = arith.cmpi eq, %arg1, %c0_i32_24 : i32
    %48 = arith.extui %47 : i1 to i32
    %c0_i32_25 = arith.constant 0 : i32
    %49 = arith.cmpi ne, %48, %c0_i32_25 : i32
    scf.if %49 {
      %c8_i32_26 = arith.constant 8 : i32
      %50 = vector.broadcast %c8_i32_26 : i32 to vector<128x1xi32>
      %51 = arith.cmpi slt, %14, %50 : vector<128x1xi32>
      %c0_27 = arith.constant 0 : index
      %c0_28 = arith.constant 0 : index
      %52 = vector.load %arg8[%c0_27, %c0_28] : memref<128x1xf32, #tpu.memory_space<vmem>>, vector<128x1xf32>
      %cst_29 = arith.constant 9.99999971E-10 : f32
      %53 = vector.broadcast %cst_29 : f32 to vector<128x1xf32>
      %54 = arith.addf %52, %53 : vector<128x1xf32>
      %55 = math.log %54 : vector<128x1xf32>
      %c0_30 = arith.constant 0 : index
      %c0_31 = arith.constant 0 : index
      %56 = vector.load %arg7[%c0_30, %c0_31] : memref<128x1xf32, #tpu.memory_space<vmem>>, vector<128x1xf32>
      %57 = math.log %56 : vector<128x1xf32>
      %58 = arith.subf %55, %57 : vector<128x1xf32>
      %cst_32 = arith.constant 0.000000e+00 : f32
      %59 = vector.broadcast %cst_32 : f32 to vector<128x1xf32>
      %60 = arith.select %51, %58, %59 : vector<128x1xi1>, vector<128x1xf32>
      %c0_33 = arith.constant 0 : index
      %c0_34 = arith.constant 0 : index
      %61 = vector.load %arg6[%c0_33, %c0_34] : memref<128x1xf32, #tpu.memory_space<vmem>>, vector<128x1xf32>
      tpu.vector_store %arg6[%c0_33, %c0_34], %60 {strides = array<i32>} : memref<128x1xf32, #tpu.memory_space<vmem>>, vector<128x1xf32>,
    } else {
    }
    return
  }
  func.func @transform_0(%arg0: i32, %arg1: i32) -> (i32, i32) {
    %c0_i32 = arith.constant 0 : i32
    %c0_i32_0 = arith.constant 0 : i32
    return %arg0, %c0_i32 : i32, i32
  }
  func.func @transform_1(%arg0: i32, %arg1: i32) -> (i32, i32) {
    %c0_i32 = arith.constant 0 : i32
    %c0_i32_0 = arith.constant 0 : i32
    return %arg1, %c0_i32 : i32, i32
  }
  func.func @transform_2(%arg0: i32, %arg1: i32) -> (i32, i32) {
    %c0_i32 = arith.constant 0 : i32
    %c0_i32_0 = arith.constant 0 : i32
    return %arg0, %c0_i32 : i32, i32
  }
  func.func @transform_3(%arg0: i32, %arg1: i32) -> (i32, i32) {
    %c0_i32 = arith.constant 0 : i32
    %c0_i32_0 = arith.constant 0 : i32
    return %c0_i32, %arg1 : i32, i32
  }
  func.func @transform_4(%arg0: i32, %arg1: i32) -> (i32, i32) {
    %c0_i32 = arith.constant 0 : i32
    %c0_i32_0 = arith.constant 0 : i32
    return %arg0, %c0_i32 : i32, i32
  }
}

</mosaic_0001>

<llo_original>
// kernel: soft_nearest_neighbor_loss.1
$region0: #{soft_nearest_neighbor_loss.1}
  #allocation0 [shape = 'u32[]', space=smem, size = 0x4, offset = 0x4, fixed_abs, tag = 'smem constant byte address 0x4 - core index']
  #allocation1 [shape = 'u32[144,128]{1,0:T(1,128)}', space=vmem, size = 0x12000, scoped, tag = 'internal scratch']
  #allocation2 [shape = 'f32[128,1]{1,0:T(8,128)}', space=vmem, size = 0x10000, scoped, tag = 'scratch operand']
  #allocation3 [shape = 'f32[128,1]{1,0:T(8,128)}', space=vmem, size = 0x10000, scoped, tag = 'scratch operand']
  %s0 = inlined_call_operand.vmem [shape: bf16[128,128], index: 0, kind: input, shape index: {}, may-alias: {0,1}]
  %s1 = inlined_call_operand.vmem [shape: bf16[128,128], index: 1, kind: input, shape index: {}, may-alias: {0,1}]
  %s2 = inlined_call_operand.vmem [shape: s32[128,1], index: 2, kind: input, shape index: {}]
  %s3 = inlined_call_operand.vmem [shape: s32[1,128], index: 3, kind: input, shape index: {}]
  %s4 = inlined_call_operand.vmem [shape: f32[128,1], index: 4, kind: output, shape index: {}]
  %s5 = sld [smem:[#allocation0]]
  $region34: #{soft_nearest_neighbor_loss.1} parent=0
    _
  %s7 = ssub.s32 1, %s5
  %s8 = scalar_select 0, %s7, %s5
  // Predicated region
  $region2: #{soft_nearest_neighbor_loss.1} parent=0 // pred_check
    _
  $region3: #{soft_nearest_neighbor_loss.1} parent=0 // pred_check_branch
    %10 = sbr.rel (0) target = $region5
  $region4: #{soft_nearest_neighbor_loss.1} parent=0 // pred_region
    _
  $region5: #{soft_nearest_neighbor_loss.1} parent=0 // pred_fallthru
    _
  // Predicated region
  $region6: #{soft_nearest_neighbor_loss.1} parent=0 // pred_check
    _
  $region7: #{soft_nearest_neighbor_loss.1} parent=0 // pred_check_branch
    %12 = sbr.rel (0) target = $region9
  $region8: #{soft_nearest_neighbor_loss.1} parent=0 // pred_region
    _
  $region9: #{soft_nearest_neighbor_loss.1} parent=0 // pred_fallthru
    _
  // Predicated region
  $region10: #{soft_nearest_neighbor_loss.1} parent=0 // pred_check
    _
  $region11: #{soft_nearest_neighbor_loss.1} parent=0 // pred_check_branch
    %14 = sbr.rel (0) target = $region13
  $region12: #{soft_nearest_neighbor_loss.1} parent=0 // pred_region
    _
  $region13: #{soft_nearest_neighbor_loss.1} parent=0 // pred_fallthru
    _
  // Predicated region
  $region14: #{soft_nearest_neighbor_loss.1} parent=0 // pred_check
    _
  $region15: #{soft_nearest_neighbor_loss.1} parent=0 // pred_check_branch
    %16 = sbr.rel (0) target = $region17
  $region16: #{soft_nearest_neighbor_loss.1} parent=0 // pred_region
    _
  $region17: #{soft_nearest_neighbor_loss.1} parent=0 // pred_fallthru
    _
  %p18 = scmp.eq.s32.totalorder 0, 0
  // Predicated region
  $region18: #{soft_nearest_neighbor_loss.1} parent=0 // pred_check
    %p19 = pneg %p18
  $region19: #{soft_nearest_neighbor_loss.1} parent=0 // pred_check_branch
    %21 = sbr.rel (%p19) target = $region21
  $region20: #{soft_nearest_neighbor_loss.1} parent=0 // pred_region
    %vm22 = vcmask 7168
    %23 = vst.msk [vmem:[#allocation2] sm:$0xff] %vm22, 0.0
    %24 = vst.msk [vmem:[#allocation2 + $0x8] sm:$0xff] %vm22, 0.0
    %25 = vst.msk [vmem:[#allocation2 + $0x10] sm:$0xff] %vm22, 0.0
    %26 = vst.msk [vmem:[#allocation2 + $0x18] sm:$0xff] %vm22, 0.0
    %27 = vst.msk [vmem:[#allocation2 + $0x20] sm:$0xff] %vm22, 0.0
    %28 = vst.msk [vmem:[#allocation2 + $0x28] sm:$0xff] %vm22, 0.0
    %29 = vst.msk [vmem:[#allocation2 + $0x30] sm:$0xff] %vm22, 0.0
    %30 = vst.msk [vmem:[#allocation2 + $0x38] sm:$0xff] %vm22, 0.0
    %31 = vst.msk [vmem:[#allocation2 + $0x40] sm:$0xff] %vm22, 0.0
    %32 = vst.msk [vmem:[#allocation2 + $0x48] sm:$0xff] %vm22, 0.0
    %33 = vst.msk [vmem:[#allocation2 + $0x50] sm:$0xff] %vm22, 0.0
    %34 = vst.msk [vmem:[#allocation2 + $0x58] sm:$0xff] %vm22, 0.0
    %35 = vst.msk [vmem:[#allocation2 + $0x60] sm:$0xff] %vm22, 0.0
    %36 = vst.msk [vmem:[#allocation2 + $0x68] sm:$0xff] %vm22, 0.0
    %37 = vst.msk [vmem:[#allocation2 + $0x70] sm:$0xff] %vm22, 0.0
    %38 = vst.msk [vmem:[#allocation2 + $0x78] sm:$0xff] %vm22, 0.0
    %39 = vst.msk [vmem:[#allocation3] sm:$0xff] %vm22, 0.0
    %40 = vst.msk [vmem:[#allocation3 + $0x8] sm:$0xff] %vm22, 0.0
    %41 = vst.msk [vmem:[#allocation3 + $0x10] sm:$0xff] %vm22, 0.0
    %42 = vst.msk [vmem:[#allocation3 + $0x18] sm:$0xff] %vm22, 0.0
    %43 = vst.msk [vmem:[#allocation3 + $0x20] sm:$0xff] %vm22, 0.0
    %44 = vst.msk [vmem:[#allocation3 + $0x28] sm:$0xff] %vm22, 0.0
    %45 = vst.msk [vmem:[#allocation3 + $0x30] sm:$0xff] %vm22, 0.0
    %46 = vst.msk [vmem:[#allocation3 + $0x38] sm:$0xff] %vm22, 0.0
    %47 = vst.msk [vmem:[#allocation3 + $0x40] sm:$0xff] %vm22, 0.0
    %48 = vst.msk [vmem:[#allocation3 + $0x48] sm:$0xff] %vm22, 0.0
    %49 = vst.msk [vmem:[#allocation3 + $0x50] sm:$0xff] %vm22, 0.0
    %50 = vst.msk [vmem:[#allocation3 + $0x58] sm:$0xff] %vm22, 0.0
    %51 = vst.msk [vmem:[#allocation3 + $0x60] sm:$0xff] %vm22, 0.0
    %52 = vst.msk [vmem:[#allocation3 + $0x68] sm:$0xff] %vm22, 0.0
    %53 = vst.msk [vmem:[#allocation3 + $0x70] sm:$0xff] %vm22, 0.0
    %54 = vst.msk [vmem:[#allocation3 + $0x78] sm:$0xff] %vm22, 0.0
  $region21: #{soft_nearest_neighbor_loss.1} parent=0 // pred_fallthru
    _
  %v55 = vld [vmem:[%s0] sm:$0xf]
  %v56 = vld [vmem:[%s0 + $0x4] sm:$0xf]
  %v57 = vld [vmem:[%s0 + $0x8] sm:$0xf]
  %v58 = vld [vmem:[%s0 + $0xc] sm:$0xf]
  %v59 = vld [vmem:[%s0 + $0x10] sm:$0xf]
  %v60 = vld [vmem:[%s0 + $0x14] sm:$0xf]
  %v61 = vld [vmem:[%s0 + $0x18] sm:$0xf]
  %v62 = vld [vmem:[%s0 + $0x1c] sm:$0xf]
  %v63 = vld [vmem:[%s0 + $0x20] sm:$0xf]
  %v64 = vld [vmem:[%s0 + $0x24] sm:$0xf]
  %v65 = vld [vmem:[%s0 + $0x28] sm:$0xf]
  %v66 = vld [vmem:[%s0 + $0x2c] sm:$0xf]
  %v67 = vld [vmem:[%s0 + $0x30] sm:$0xf]
  %v68 = vld [vmem:[%s0 + $0x34] sm:$0xf]
  %v69 = vld [vmem:[%s0 + $0x38] sm:$0xf]
  %v70 = vld [vmem:[%s0 + $0x3c] sm:$0xf]
  %v71 = vld [vmem:[%s1] sm:$0xf]
  %v72 = vld [vmem:[%s1 + $0x4] sm:$0xf]
  %v73 = vld [vmem:[%s1 + $0x8] sm:$0xf]
  %v74 = vld [vmem:[%s1 + $0xc] sm:$0xf]
  %v75 = vld [vmem:[%s1 + $0x10] sm:$0xf]
  %v76 = vld [vmem:[%s1 + $0x14] sm:$0xf]
  %v77 = vld [vmem:[%s1 + $0x18] sm:$0xf]
  %v78 = vld [vmem:[%s1 + $0x1c] sm:$0xf]
  %v79 = vld [vmem:[%s1 + $0x20] sm:$0xf]
  %v80 = vld [vmem:[%s1 + $0x24] sm:$0xf]
  %v81 = vld [vmem:[%s1 + $0x28] sm:$0xf]
  %v82 = vld [vmem:[%s1 + $0x2c] sm:$0xf]
  %v83 = vld [vmem:[%s1 + $0x30] sm:$0xf]
  %v84 = vld [vmem:[%s1 + $0x34] sm:$0xf]
  %v85 = vld [vmem:[%s1 + $0x38] sm:$0xf]
  %v86 = vld [vmem:[%s1 + $0x3c] sm:$0xf]
  %v103 = vunpack.c.l.b16 %v55
  %v104 = vunpack.c.l.b16 %v56
  %v105 = vunpack.c.l.b16 %v57
  %v106 = vunpack.c.l.b16 %v58
  %v107 = vunpack.c.l.b16 %v59
  %v108 = vunpack.c.l.b16 %v60
  %v109 = vunpack.c.l.b16 %v61
  %v110 = vunpack.c.l.b16 %v62
  %v111 = vunpack.c.l.b16 %v63
  %v112 = vunpack.c.l.b16 %v64
  %v113 = vunpack.c.l.b16 %v65
  %v114 = vunpack.c.l.b16 %v66
  %v115 = vunpack.c.l.b16 %v67
  %v116 = vunpack.c.l.b16 %v68
  %v117 = vunpack.c.l.b16 %v69
  %v118 = vunpack.c.l.b16 %v70
  %v119 = vpack.c.b16 %v104, %v103
  %v120 = vpack.c.b16 %v106, %v105
  %v121 = vpack.c.b16 %v108, %v107
  %v122 = vpack.c.b16 %v110, %v109
  %v123 = vpack.c.b16 %v112, %v111
  %v124 = vpack.c.b16 %v114, %v113
  %v125 = vpack.c.b16 %v116, %v115
  %v126 = vpack.c.b16 %v118, %v117
  %v151 = vunpack.c.l.b16 %v71
  %v152 = vunpack.c.l.b16 %v72
  %v153 = vunpack.c.l.b16 %v73
  %v154 = vunpack.c.l.b16 %v74
  %v155 = vunpack.c.l.b16 %v75
  %v156 = vunpack.c.l.b16 %v76
  %v157 = vunpack.c.l.b16 %v77
  %v158 = vunpack.c.l.b16 %v78
  %v159 = vunpack.c.l.b16 %v79
  %v160 = vunpack.c.l.b16 %v80
  %v161 = vunpack.c.l.b16 %v81
  %v162 = vunpack.c.l.b16 %v82
  %v163 = vunpack.c.l.b16 %v83
  %v164 = vunpack.c.l.b16 %v84
  %v165 = vunpack.c.l.b16 %v85
  %v166 = vunpack.c.l.b16 %v86
  %v167 = vpack.c.b16 %v152, %v151
  %v168 = vpack.c.b16 %v154, %v153
  %v169 = vpack.c.b16 %v156, %v155
  %v170 = vpack.c.b16 %v158, %v157
  %v171 = vpack.c.b16 %v160, %v159
  %v172 = vpack.c.b16 %v162, %v161
  %v173 = vpack.c.b16 %v164, %v163
  %v174 = vpack.c.b16 %v166, %v165
  %183 = vmatprep.subr.bf16.mxu0 0
  %184 = vmatpush1.bf16.xpose.msra.mxu0 %v167
  %185 = vmatprep.subr.bf16.mxu0 0
  %186 = vmatpush1.bf16.xpose.msra.mxu0 %v168
  %187 = vmatprep.subr.bf16.mxu0 0
  %188 = vmatpush1.bf16.xpose.msra.mxu0 %v169
  %189 = vmatprep.subr.bf16.mxu0 0
  %190 = vmatpush1.bf16.xpose.msra.mxu0 %v170
  %191 = vmatprep.subr.bf16.mxu0 0
  %192 = vmatpush1.bf16.xpose.msra.mxu0 %v171
  %193 = vmatprep.subr.bf16.mxu0 0
  %194 = vmatpush1.bf16.xpose.msra.mxu0 %v172
  %195 = vmatprep.subr.bf16.mxu0 0
  %196 = vmatpush1.bf16.xpose.msra.mxu0 %v173
  %197 = vmatprep.subr.bf16.mxu0 0
  %198 = vmatpush1.bf16.xpose.msra.mxu0 %v174
  %199 = vmatprep.subr.bf16.mxu0 0
  %200 = vmatpush1.bf16.xpose.msra.mxu0 0
  %201 = vmatprep.subr.bf16.mxu0 0
  %202 = vmatpush1.bf16.xpose.msra.mxu0 0
  %203 = vmatprep.subr.bf16.mxu0 0
  %204 = vmatpush1.bf16.xpose.msra.mxu0 0
  %205 = vmatprep.subr.bf16.mxu0 0
  %206 = vmatpush1.bf16.xpose.msra.mxu0 0
  %207 = vmatprep.subr.bf16.mxu0 0
  %208 = vmatpush1.bf16.xpose.msra.mxu0 0
  %209 = vmatprep.subr.bf16.mxu0 0
  %210 = vmatpush1.bf16.xpose.msra.mxu0 0
  %211 = vmatprep.subr.bf16.mxu0 0
  %212 = vmatpush1.bf16.xpose.msra.mxu0 0
  %213 = vmatprep.subr.bf16.mxu0 0
  %214 = vmatpush1.bf16.xpose.msra.mxu0 0
  %215 = vmatprep.mubr.bf16.mxu0 0
  %216 = vmatmul.mubr.bf16.gmra.mrb[0].mxu0 %v119
  %v217 = vpop.f32.mrb[0].mxu0
  %v218 = vadd.f32 0.0, %v217
  %v219 = vpop.f32.mrb[0].mxu0
  %v220 = vpop.f32.mrb[0].mxu0
  %v221 = vadd.f32 0.0, %v220
  %v222 = vpop.f32.mrb[0].mxu0
  %223 = vmatprep.mubr.bf16.mxu0 0
  %224 = vmatmul.mubr.bf16.gmra.mrb[0].mxu0 %v120
  %v225 = vpop.f32.mrb[0].mxu0
  %v226 = vadd.f32 0.0, %v225
  %v227 = vpop.f32.mrb[0].mxu0
  %v228 = vpop.f32.mrb[0].mxu0
  %v229 = vadd.f32 0.0, %v228
  %v230 = vpop.f32.mrb[0].mxu0
  %231 = vmatprep.mubr.bf16.mxu0 0
  %232 = vmatmul.mubr.bf16.gmra.mrb[0].mxu0 %v121
  %v233 = vpop.f32.mrb[0].mxu0
  %v234 = vadd.f32 0.0, %v233
  %v235 = vpop.f32.mrb[0].mxu0
  %v236 = vpop.f32.mrb[0].mxu0
  %v237 = vadd.f32 0.0, %v236
  %v238 = vpop.f32.mrb[0].mxu0
  %239 = vmatprep.mubr.bf16.mxu0 0
  %240 = vmatmul.mubr.bf16.gmra.mrb[0].mxu0 %v122
  %v241 = vpop.f32.mrb[0].mxu0
  %v242 = vadd.f32 0.0, %v241
  %v243 = vpop.f32.mrb[0].mxu0
  %v244 = vpop.f32.mrb[0].mxu0
  %v245 = vadd.f32 0.0, %v244
  %v246 = vpop.f32.mrb[0].mxu0
  %247 = vmatprep.mubr.bf16.mxu0 0
  %248 = vmatmul.mubr.bf16.gmra.mrb[0].mxu0 %v123
  %v249 = vpop.f32.mrb[0].mxu0
  %v250 = vadd.f32 0.0, %v249
  %v251 = vpop.f32.mrb[0].mxu0
  %v252 = vpop.f32.mrb[0].mxu0
  %v253 = vadd.f32 0.0, %v252
  %v254 = vpop.f32.mrb[0].mxu0
  %255 = vmatprep.mubr.bf16.mxu0 0
  %256 = vmatmul.mubr.bf16.gmra.mrb[0].mxu0 %v124
  %v257 = vpop.f32.mrb[0].mxu0
  %v258 = vadd.f32 0.0, %v257
  %v259 = vpop.f32.mrb[0].mxu0
  %v260 = vpop.f32.mrb[0].mxu0
  %v261 = vadd.f32 0.0, %v260
  %v262 = vpop.f32.mrb[0].mxu0
  %263 = vmatprep.mubr.bf16.mxu0 0
  %264 = vmatmul.mubr.bf16.gmra.mrb[0].mxu0 %v125
  %v265 = vpop.f32.mrb[0].mxu0
  %v266 = vadd.f32 0.0, %v265
  %v267 = vpop.f32.mrb[0].mxu0
  %v268 = vpop.f32.mrb[0].mxu0
  %v269 = vadd.f32 0.0, %v268
  %v270 = vpop.f32.mrb[0].mxu0
  %271 = vmatprep.mubr.bf16.mxu0 0
  %272 = vmatmul.mubr.bf16.gmra.mrb[0].mxu0 %v126
  %v273 = vpop.f32.mrb[0].mxu0
  %v274 = vadd.f32 0.0, %v273
  %v275 = vpop.f32.mrb[0].mxu0
  %v276 = vpop.f32.mrb[0].mxu0
  %v277 = vadd.f32 0.0, %v276
  %v278 = vpop.f32.mrb[0].mxu0
  %279 = vdwg.mxu0
  %v280 = vsub.f32 %v218, 1.0
  %v281 = vsub.f32 %v221, 1.0
  %v282 = vsub.f32 %v226, 1.0
  %v283 = vsub.f32 %v229, 1.0
  %v284 = vsub.f32 %v234, 1.0
  %v285 = vsub.f32 %v237, 1.0
  %v286 = vsub.f32 %v242, 1.0
  %v287 = vsub.f32 %v245, 1.0
  %v288 = vsub.f32 %v250, 1.0
  %v289 = vsub.f32 %v253, 1.0
  %v290 = vsub.f32 %v258, 1.0
  %v291 = vsub.f32 %v261, 1.0
  %v292 = vsub.f32 %v266, 1.0
  %v293 = vsub.f32 %v269, 1.0
  %v294 = vsub.f32 %v274, 1.0
  %v295 = vsub.f32 %v277, 1.0
  %v296 = vmul.f32 %v280, 1.442695
  %v297 = vpow.pop %v296
  %v298 = vmul.f32 %v281, 1.442695
  %v299 = vpow.pop %v298
  %v300 = vmul.f32 %v282, 1.442695
  %v301 = vpow.pop %v300
  %v302 = vmul.f32 %v283, 1.442695
  %v303 = vpow.pop %v302
  %v304 = vmul.f32 %v284, 1.442695
  %v305 = vpow.pop %v304
  %v306 = vmul.f32 %v285, 1.442695
  %v307 = vpow.pop %v306
  %v308 = vmul.f32 %v286, 1.442695
  %v309 = vpow.pop %v308
  %v310 = vmul.f32 %v287, 1.442695
  %v311 = vpow.pop %v310
  %v312 = vmul.f32 %v288, 1.442695
  %v313 = vpow.pop %v312
  %v314 = vmul.f32 %v289, 1.442695
  %v315 = vpow.pop %v314
  %v316 = vmul.f32 %v290, 1.442695
  %v317 = vpow.pop %v316
  %v318 = vmul.f32 %v291, 1.442695
  %v319 = vpow.pop %v318
  %v320 = vmul.f32 %v292, 1.442695
  %v321 = vpow.pop %v320
  %v322 = vmul.f32 %v293, 1.442695
  %v323 = vpow.pop %v322
  %v324 = vmul.f32 %v294, 1.442695
  %v325 = vpow.pop %v324
  %v326 = vmul.f32 %v295, 1.442695
  %v327 = vpow.pop %v326
  %v328 = vlaneseq
  %v329 = vshrl.u32 %v328, 7
  %v330 = vadd.s32 %v329, 8
  %v331 = vadd.s32 %v329, 16
  %v332 = vadd.s32 %v329, 24
  %v333 = vadd.s32 %v329, 32
  %v334 = vadd.s32 %v329, 40
  %v335 = vadd.s32 %v329, 48
  %v336 = vadd.s32 %v329, 56
  %v337 = vadd.s32 %v329, 64
  %v338 = vadd.s32 %v329, 72
  %v339 = vadd.s32 %v329, 80
  %v340 = vadd.s32 %v329, 88
  %v341 = vadd.s32 %v329, 96
  %v342 = vadd.s32 %v329, 104
  %v343 = vadd.s32 %v329, 112
  %v344 = vadd.s32 %v329, 120
  %s345 = smul.u32 0, 128
  %v346 = vstv %s345
  %v347 = vadd.s32 %v329, %v346
  %v348 = vadd.s32 %v330, %v346
  %v349 = vadd.s32 %v331, %v346
  %v350 = vadd.s32 %v332, %v346
  %v351 = vadd.s32 %v333, %v346
  %v352 = vadd.s32 %v334, %v346
  %v353 = vadd.s32 %v335, %v346
  %v354 = vadd.s32 %v336, %v346
  %v355 = vadd.s32 %v337, %v346
  %v356 = vadd.s32 %v338, %v346
  %v357 = vadd.s32 %v339, %v346
  %v358 = vadd.s32 %v340, %v346
  %v359 = vadd.s32 %v341, %v346
  %v360 = vadd.s32 %v342, %v346
  %v361 = vadd.s32 %v343, %v346
  %v362 = vadd.s32 %v344, %v346
  %v363 = vlaneseq
  %v364 = vand.u32 %v363, 127
  %s365 = smul.u32 0, 128
  %v366 = vstv %s365
  %v367 = vadd.s32 %v364, %v366
  %vm368 = vcmp.lt.s32.totalorder %v367, 8
  %vm369 = vcmp.ne.s32.totalorder %v347, %v367
  %vm370 = vcmp.ne.s32.totalorder %v348, %v367
  %vm371 = vcmp.ne.s32.totalorder %v349, %v367
  %vm372 = vcmp.ne.s32.totalorder %v350, %v367
  %vm373 = vcmp.ne.s32.totalorder %v351, %v367
  %vm374 = vcmp.ne.s32.totalorder %v352, %v367
  %vm375 = vcmp.ne.s32.totalorder %v353, %v367
  %vm376 = vcmp.ne.s32.totalorder %v354, %v367
  %vm377 = vcmp.ne.s32.totalorder %v355, %v367
  %vm378 = vcmp.ne.s32.totalorder %v356, %v367
  %vm379 = vcmp.ne.s32.totalorder %v357, %v367
  %vm380 = vcmp.ne.s32.totalorder %v358, %v367
  %vm381 = vcmp.ne.s32.totalorder %v359, %v367
  %vm382 = vcmp.ne.s32.totalorder %v360, %v367
  %vm383 = vcmp.ne.s32.totalorder %v361, %v367
  %vm384 = vcmp.ne.s32.totalorder %v362, %v367
  %v385 = vld [vmem:[%s2] sm:$0xff]
  %v386 = vld [vmem:[%s2 + $0x8] sm:$0xff]
  %v387 = vld [vmem:[%s2 + $0x10] sm:$0xff]
  %v388 = vld [vmem:[%s2 + $0x18] sm:$0xff]
  %v389 = vld [vmem:[%s2 + $0x20] sm:$0xff]
  %v390 = vld [vmem:[%s2 + $0x28] sm:$0xff]
  %v391 = vld [vmem:[%s2 + $0x30] sm:$0xff]
  %v392 = vld [vmem:[%s2 + $0x38] sm:$0xff]
  %v393 = vld [vmem:[%s2 + $0x40] sm:$0xff]
  %v394 = vld [vmem:[%s2 + $0x48] sm:$0xff]
  %v395 = vld [vmem:[%s2 + $0x50] sm:$0xff]
  %v396 = vld [vmem:[%s2 + $0x58] sm:$0xff]
  %v397 = vld [vmem:[%s2 + $0x60] sm:$0xff]
  %v398 = vld [vmem:[%s2 + $0x68] sm:$0xff]
  %v399 = vld [vmem:[%s2 + $0x70] sm:$0xff]
  %v400 = vld [vmem:[%s2 + $0x78] sm:$0xff]
  %v401 = vld [vmem:[%s3] sm:$0x1]
  %402 = vset.pattern.permute.xlu0 0
  %403 = vperm.xlu0 %402, %v385
  %v404 = vpop.permute.xlu0 %403
  %405 = vset.pattern.permute.xlu0 0
  %406 = vperm.xlu0 %405, %v386
  %v407 = vpop.permute.xlu0 %406
  %408 = vset.pattern.permute.xlu0 0
  %409 = vperm.xlu0 %408, %v387
  %v410 = vpop.permute.xlu0 %409
  %411 = vset.pattern.permute.xlu0 0
  %412 = vperm.xlu0 %411, %v388
  %v413 = vpop.permute.xlu0 %412
  %414 = vset.pattern.permute.xlu0 0
  %415 = vperm.xlu0 %414, %v389
  %v416 = vpop.permute.xlu0 %415
  %417 = vset.pattern.permute.xlu0 0
  %418 = vperm.xlu0 %417, %v390
  %v419 = vpop.permute.xlu0 %418
  %420 = vset.pattern.permute.xlu0 0
  %421 = vperm.xlu0 %420, %v391
  %v422 = vpop.permute.xlu0 %421
  %423 = vset.pattern.permute.xlu0 0
  %424 = vperm.xlu0 %423, %v392
  %v425 = vpop.permute.xlu0 %424
  %426 = vset.pattern.permute.xlu0 0
  %427 = vperm.xlu0 %426, %v393
  %v428 = vpop.permute.xlu0 %427
  %429 = vset.pattern.permute.xlu0 0
  %430 = vperm.xlu0 %429, %v394
  %v431 = vpop.permute.xlu0 %430
  %432 = vset.pattern.permute.xlu0 0
  %433 = vperm.xlu0 %432, %v395
  %v434 = vpop.permute.xlu0 %433
  %435 = vset.pattern.permute.xlu0 0
  %436 = vperm.xlu0 %435, %v396
  %v437 = vpop.permute.xlu0 %436
  %438 = vset.pattern.permute.xlu0 0
  %439 = vperm.xlu0 %438, %v397
  %v440 = vpop.permute.xlu0 %439
  %441 = vset.pattern.permute.xlu0 0
  %442 = vperm.xlu0 %441, %v398
  %v443 = vpop.permute.xlu0 %442
  %444 = vset.pattern.permute.xlu0 0
  %445 = vperm.xlu0 %444, %v399
  %v446 = vpop.permute.xlu0 %445
  %447 = vset.pattern.permute.xlu0 0
  %448 = vperm.xlu0 %447, %v400
  %v449 = vpop.permute.xlu0 %448
  %v450 = vlaneseq
  %v451 = vshrl.u32 %v450, 7
  %v452 = vsub.s32 0, %v451
  %v453 = vrot.slane %v401, %v452
  %vm454 = vcmp.eq.s32.totalorder %v404, %v453
  %vm455 = vcmp.eq.s32.totalorder %v407, %v453
  %vm456 = vcmp.eq.s32.totalorder %v410, %v453
  %vm457 = vcmp.eq.s32.totalorder %v413, %v453
  %vm458 = vcmp.eq.s32.totalorder %v416, %v453
  %vm459 = vcmp.eq.s32.totalorder %v419, %v453
  %vm460 = vcmp.eq.s32.totalorder %v422, %v453
  %vm461 = vcmp.eq.s32.totalorder %v425, %v453
  %vm462 = vcmp.eq.s32.totalorder %v428, %v453
  %vm463 = vcmp.eq.s32.totalorder %v431, %v453
  %vm464 = vcmp.eq.s32.totalorder %v434, %v453
  %vm465 = vcmp.eq.s32.totalorder %v437, %v453
  %vm466 = vcmp.eq.s32.totalorder %v440, %v453
  %vm467 = vcmp.eq.s32.totalorder %v443, %v453
  %vm468 = vcmp.eq.s32.totalorder %v446, %v453
  %vm469 = vcmp.eq.s32.totalorder %v449, %v453
  %v470 = vsel %vm368, 1, 0
  %vm471 = vcmp.eq.s32.totalorder %v470, 1
  %v472 = vsel %vm471, %v297, 0.0
  %v473 = vsel %vm471, %v299, 0.0
  %v474 = vsel %vm471, %v301, 0.0
  %v475 = vsel %vm471, %v303, 0.0
  %v476 = vsel %vm471, %v305, 0.0
  %v477 = vsel %vm471, %v307, 0.0
  %v478 = vsel %vm471, %v309, 0.0
  %v479 = vsel %vm471, %v311, 0.0
  %v480 = vsel %vm471, %v313, 0.0
  %v481 = vsel %vm471, %v315, 0.0
  %v482 = vsel %vm471, %v317, 0.0
  %v483 = vsel %vm471, %v319, 0.0
  %v484 = vsel %vm471, %v321, 0.0
  %v485 = vsel %vm471, %v323, 0.0
  %v486 = vsel %vm471, %v325, 0.0
  %v487 = vsel %vm471, %v327, 0.0
  %v488 = vld [vmem:[#allocation2] sm:$0xff]
  %v489 = vld [vmem:[#allocation2 + $0x8] sm:$0xff]
  %v490 = vld [vmem:[#allocation2 + $0x10] sm:$0xff]
  %v491 = vld [vmem:[#allocation2 + $0x18] sm:$0xff]
  %v492 = vld [vmem:[#allocation2 + $0x20] sm:$0xff]
  %v493 = vld [vmem:[#allocation2 + $0x28] sm:$0xff]
  %v494 = vld [vmem:[#allocation2 + $0x30] sm:$0xff]
  %v495 = vld [vmem:[#allocation2 + $0x38] sm:$0xff]
  %v496 = vld [vmem:[#allocation2 + $0x40] sm:$0xff]
  %v497 = vld [vmem:[#allocation2 + $0x48] sm:$0xff]
  %v498 = vld [vmem:[#allocation2 + $0x50] sm:$0xff]
  %v499 = vld [vmem:[#allocation2 + $0x58] sm:$0xff]
  %v500 = vld [vmem:[#allocation2 + $0x60] sm:$0xff]
  %v501 = vld [vmem:[#allocation2 + $0x68] sm:$0xff]
  %v502 = vld [vmem:[#allocation2 + $0x70] sm:$0xff]
  %v503 = vld [vmem:[#allocation2 + $0x78] sm:$0xff]
  %v504 = vsel %vm369, %v472, 0.0
  %v505 = vsel %vm370, %v473, 0.0
  %v506 = vsel %vm371, %v474, 0.0
  %v507 = vsel %vm372, %v475, 0.0
  %v508 = vsel %vm373, %v476, 0.0
  %v509 = vsel %vm374, %v477, 0.0
  %v510 = vsel %vm375, %v478, 0.0
  %v511 = vsel %vm376, %v479, 0.0
  %v512 = vsel %vm377, %v480, 0.0
  %v513 = vsel %vm378, %v481, 0.0
  %v514 = vsel %vm379, %v482, 0.0
  %v515 = vsel %vm380, %v483, 0.0
  %v516 = vsel %vm381, %v484, 0.0
  %v517 = vsel %vm382, %v485, 0.0
  %v518 = vsel %vm383, %v486, 0.0
  %v519 = vsel %vm384, %v487, 0.0
  %520 = vadd.xlane.f32.xlu0 %v504
  %v521 = vpop.xlane.xlu0 %520
  %522 = vadd.xlane.f32.xlu0 %v505
  %v523 = vpop.xlane.xlu0 %522
  %524 = vadd.xlane.f32.xlu0 %v506
  %v525 = vpop.xlane.xlu0 %524
  %526 = vadd.xlane.f32.xlu0 %v507
  %v527 = vpop.xlane.xlu0 %526
  %528 = vadd.xlane.f32.xlu0 %v508
  %v529 = vpop.xlane.xlu0 %528
  %530 = vadd.xlane.f32.xlu0 %v509
  %v531 = vpop.xlane.xlu0 %530
  %532 = vadd.xlane.f32.xlu0 %v510
  %v533 = vpop.xlane.xlu0 %532
  %534 = vadd.xlane.f32.xlu0 %v511
  %v535 = vpop.xlane.xlu0 %534
  %536 = vadd.xlane.f32.xlu0 %v512
  %v537 = vpop.xlane.xlu0 %536
  %538 = vadd.xlane.f32.xlu0 %v513
  %v539 = vpop.xlane.xlu0 %538
  %540 = vadd.xlane.f32.xlu0 %v514
  %v541 = vpop.xlane.xlu0 %540
  %542 = vadd.xlane.f32.xlu0 %v515
  %v543 = vpop.xlane.xlu0 %542
  %544 = vadd.xlane.f32.xlu0 %v516
  %v545 = vpop.xlane.xlu0 %544
  %546 = vadd.xlane.f32.xlu0 %v517
  %v547 = vpop.xlane.xlu0 %546
  %548 = vadd.xlane.f32.xlu0 %v518
  %v549 = vpop.xlane.xlu0 %548
  %550 = vadd.xlane.f32.xlu0 %v519
  %v551 = vpop.xlane.xlu0 %550
  %v552 = vadd.f32 %v488, %v521
  %v553 = vadd.f32 %v489, %v523
  %v554 = vadd.f32 %v490, %v525
  %v555 = vadd.f32 %v491, %v527
  %v556 = vadd.f32 %v492, %v529
  %v557 = vadd.f32 %v493, %v531
  %v558 = vadd.f32 %v494, %v533
  %v559 = vadd.f32 %v495, %v535
  %v560 = vadd.f32 %v496, %v537
  %v561 = vadd.f32 %v497, %v539
  %v562 = vadd.f32 %v498, %v541
  %v563 = vadd.f32 %v499, %v543
  %v564 = vadd.f32 %v500, %v545
  %v565 = vadd.f32 %v501, %v547
  %v566 = vadd.f32 %v502, %v549
  %v567 = vadd.f32 %v503, %v551
  %vm568 = vcmask 7168
  %569 = vst.msk [vmem:[#allocation2] sm:$0xff] %vm568, %v552
  %570 = vst.msk [vmem:[#allocation2 + $0x8] sm:$0xff] %vm568, %v553
  %571 = vst.msk [vmem:[#allocation2 + $0x10] sm:$0xff] %vm568, %v554
  %572 = vst.msk [vmem:[#allocation2 + $0x18] sm:$0xff] %vm568, %v555
  %573 = vst.msk [vmem:[#allocation2 + $0x20] sm:$0xff] %vm568, %v556
  %574 = vst.msk [vmem:[#allocation2 + $0x28] sm:$0xff] %vm568, %v557
  %575 = vst.msk [vmem:[#allocation2 + $0x30] sm:$0xff] %vm568, %v558
  %576 = vst.msk [vmem:[#allocation2 + $0x38] sm:$0xff] %vm568, %v559
  %577 = vst.msk [vmem:[#allocation2 + $0x40] sm:$0xff] %vm568, %v560
  %578 = vst.msk [vmem:[#allocation2 + $0x48] sm:$0xff] %vm568, %v561
  %579 = vst.msk [vmem:[#allocation2 + $0x50] sm:$0xff] %vm568, %v562
  %580 = vst.msk [vmem:[#allocation2 + $0x58] sm:$0xff] %vm568, %v563
  %581 = vst.msk [vmem:[#allocation2 + $0x60] sm:$0xff] %vm568, %v564
  %582 = vst.msk [vmem:[#allocation2 + $0x68] sm:$0xff] %vm568, %v565
  %583 = vst.msk [vmem:[#allocation2 + $0x70] sm:$0xff] %vm568, %v566
  %584 = vst.msk [vmem:[#allocation2 + $0x78] sm:$0xff] %vm568, %v567
  %v585 = vld [vmem:[#allocation3] sm:$0xff]
  %v586 = vld [vmem:[#allocation3 + $0x8] sm:$0xff]
  %v587 = vld [vmem:[#allocation3 + $0x10] sm:$0xff]
  %v588 = vld [vmem:[#allocation3 + $0x18] sm:$0xff]
  %v589 = vld [vmem:[#allocation3 + $0x20] sm:$0xff]
  %v590 = vld [vmem:[#allocation3 + $0x28] sm:$0xff]
  %v591 = vld [vmem:[#allocation3 + $0x30] sm:$0xff]
  %v592 = vld [vmem:[#allocation3 + $0x38] sm:$0xff]
  %v593 = vld [vmem:[#allocation3 + $0x40] sm:$0xff]
  %v594 = vld [vmem:[#allocation3 + $0x48] sm:$0xff]
  %v595 = vld [vmem:[#allocation3 + $0x50] sm:$0xff]
  %v596 = vld [vmem:[#allocation3 + $0x58] sm:$0xff]
  %v597 = vld [vmem:[#allocation3 + $0x60] sm:$0xff]
  %v598 = vld [vmem:[#allocation3 + $0x68] sm:$0xff]
  %v599 = vld [vmem:[#allocation3 + $0x70] sm:$0xff]
  %v600 = vld [vmem:[#allocation3 + $0x78] sm:$0xff]
  %v601 = vsel %vm454, %v472, 0.0
  %v602 = vsel %vm455, %v473, 0.0
  %v603 = vsel %vm456, %v474, 0.0
  %v604 = vsel %vm457, %v475, 0.0
  %v605 = vsel %vm458, %v476, 0.0
  %v606 = vsel %vm459, %v477, 0.0
  %v607 = vsel %vm460, %v478, 0.0
  %v608 = vsel %vm461, %v479, 0.0
  %v609 = vsel %vm462, %v480, 0.0
  %v610 = vsel %vm463, %v481, 0.0
  %v611 = vsel %vm464, %v482, 0.0
  %v612 = vsel %vm465, %v483, 0.0
  %v613 = vsel %vm466, %v484, 0.0
  %v614 = vsel %vm467, %v485, 0.0
  %v615 = vsel %vm468, %v486, 0.0
  %v616 = vsel %vm469, %v487, 0.0
  %617 = vadd.xlane.f32.xlu0 %v601
  %v618 = vpop.xlane.xlu0 %617
  %619 = vadd.xlane.f32.xlu0 %v602
  %v620 = vpop.xlane.xlu0 %619
  %621 = vadd.xlane.f32.xlu0 %v603
  %v622 = vpop.xlane.xlu0 %621
  %623 = vadd.xlane.f32.xlu0 %v604
  %v624 = vpop.xlane.xlu0 %623
  %625 = vadd.xlane.f32.xlu0 %v605
  %v626 = vpop.xlane.xlu0 %625
  %627 = vadd.xlane.f32.xlu0 %v606
  %v628 = vpop.xlane.xlu0 %627
  %629 = vadd.xlane.f32.xlu0 %v607
  %v630 = vpop.xlane.xlu0 %629
  %631 = vadd.xlane.f32.xlu0 %v608
  %v632 = vpop.xlane.xlu0 %631
  %633 = vadd.xlane.f32.xlu0 %v609
  %v634 = vpop.xlane.xlu0 %633
  %635 = vadd.xlane.f32.xlu0 %v610
  %v636 = vpop.xlane.xlu0 %635
  %637 = vadd.xlane.f32.xlu0 %v611
  %v638 = vpop.xlane.xlu0 %637
  %639 = vadd.xlane.f32.xlu0 %v612
  %v640 = vpop.xlane.xlu0 %639
  %641 = vadd.xlane.f32.xlu0 %v613
  %v642 = vpop.xlane.xlu0 %641
  %643 = vadd.xlane.f32.xlu0 %v614
  %v644 = vpop.xlane.xlu0 %643
  %645 = vadd.xlane.f32.xlu0 %v615
  %v646 = vpop.xlane.xlu0 %645
  %647 = vadd.xlane.f32.xlu0 %v616
  %v648 = vpop.xlane.xlu0 %647
  %v649 = vadd.f32 %v585, %v618
  %v650 = vadd.f32 %v586, %v620
  %v651 = vadd.f32 %v587, %v622
  %v652 = vadd.f32 %v588, %v624
  %v653 = vadd.f32 %v589, %v626
  %v654 = vadd.f32 %v590, %v628
  %v655 = vadd.f32 %v591, %v630
  %v656 = vadd.f32 %v592, %v632
  %v657 = vadd.f32 %v593, %v634
  %v658 = vadd.f32 %v594, %v636
  %v659 = vadd.f32 %v595, %v638
  %v660 = vadd.f32 %v596, %v640
  %v661 = vadd.f32 %v597, %v642
  %v662 = vadd.f32 %v598, %v644
  %v663 = vadd.f32 %v599, %v646
  %v664 = vadd.f32 %v600, %v648
  %665 = vst.msk [vmem:[#allocation3] sm:$0xff] %vm568, %v649
  %666 = vst.msk [vmem:[#allocation3 + $0x8] sm:$0xff] %vm568, %v650
  %667 = vst.msk [vmem:[#allocation3 + $0x10] sm:$0xff] %vm568, %v651
  %668 = vst.msk [vmem:[#allocation3 + $0x18] sm:$0xff] %vm568, %v652
  %669 = vst.msk [vmem:[#allocation3 + $0x20] sm:$0xff] %vm568, %v653
  %670 = vst.msk [vmem:[#allocation3 + $0x28] sm:$0xff] %vm568, %v654
  %671 = vst.msk [vmem:[#allocation3 + $0x30] sm:$0xff] %vm568, %v655
  %672 = vst.msk [vmem:[#allocation3 + $0x38] sm:$0xff] %vm568, %v656
  %673 = vst.msk [vmem:[#allocation3 + $0x40] sm:$0xff] %vm568, %v657
  %674 = vst.msk [vmem:[#allocation3 + $0x48] sm:$0xff] %vm568, %v658
  %675 = vst.msk [vmem:[#allocation3 + $0x50] sm:$0xff] %vm568, %v659
  %676 = vst.msk [vmem:[#allocation3 + $0x58] sm:$0xff] %vm568, %v660
  %677 = vst.msk [vmem:[#allocation3 + $0x60] sm:$0xff] %vm568, %v661
  %678 = vst.msk [vmem:[#allocation3 + $0x68] sm:$0xff] %vm568, %v662
  %679 = vst.msk [vmem:[#allocation3 + $0x70] sm:$0xff] %vm568, %v663
  %680 = vst.msk [vmem:[#allocation3 + $0x78] sm:$0xff] %vm568, %v664
  // Predicated region
  $region22: #{soft_nearest_neighbor_loss.1} parent=0 // pred_check
    %p681 = pneg %p18
  $region23: #{soft_nearest_neighbor_loss.1} parent=0 // pred_check_branch
    %683 = sbr.rel (%p681) target = $region25
  $region24: #{soft_nearest_neighbor_loss.1} parent=0 // pred_region
    %vm684 = vcmp.lt.s32.totalorder %v347, 8
    %vm685 = vcmp.lt.s32.totalorder %v348, 8
    %vm686 = vcmp.lt.s32.totalorder %v349, 8
    %vm687 = vcmp.lt.s32.totalorder %v350, 8
    %vm688 = vcmp.lt.s32.totalorder %v351, 8
    %vm689 = vcmp.lt.s32.totalorder %v352, 8
    %vm690 = vcmp.lt.s32.totalorder %v353, 8
    %vm691 = vcmp.lt.s32.totalorder %v354, 8
    %vm692 = vcmp.lt.s32.totalorder %v355, 8
    %vm693 = vcmp.lt.s32.totalorder %v356, 8
    %vm694 = vcmp.lt.s32.totalorder %v357, 8
    %vm695 = vcmp.lt.s32.totalorder %v358, 8
    %vm696 = vcmp.lt.s32.totalorder %v359, 8
    %vm697 = vcmp.lt.s32.totalorder %v360, 8
    %vm698 = vcmp.lt.s32.totalorder %v361, 8
    %vm699 = vcmp.lt.s32.totalorder %v362, 8
    %v700 = vld [vmem:[#allocation3] sm:$0xff]
    %v701 = vld [vmem:[#allocation3 + $0x8] sm:$0xff]
    %v702 = vld [vmem:[#allocation3 + $0x10] sm:$0xff]
    %v703 = vld [vmem:[#allocation3 + $0x18] sm:$0xff]
    %v704 = vld [vmem:[#allocation3 + $0x20] sm:$0xff]
    %v705 = vld [vmem:[#allocation3 + $0x28] sm:$0xff]
    %v706 = vld [vmem:[#allocation3 + $0x30] sm:$0xff]
    %v707 = vld [vmem:[#allocation3 + $0x38] sm:$0xff]
    %v708 = vld [vmem:[#allocation3 + $0x40] sm:$0xff]
    %v709 = vld [vmem:[#allocation3 + $0x48] sm:$0xff]
    %v710 = vld [vmem:[#allocation3 + $0x50] sm:$0xff]
    %v711 = vld [vmem:[#allocation3 + $0x58] sm:$0xff]
    %v712 = vld [vmem:[#allocation3 + $0x60] sm:$0xff]
    %v713 = vld [vmem:[#allocation3 + $0x68] sm:$0xff]
    %v714 = vld [vmem:[#allocation3 + $0x70] sm:$0xff]
    %v715 = vld [vmem:[#allocation3 + $0x78] sm:$0xff]
    %v716 = vadd.f32 %v700, 1e-09
    %v717 = vadd.f32 %v701, 1e-09
    %v718 = vadd.f32 %v702, 1e-09
    %v719 = vadd.f32 %v703, 1e-09
    %v720 = vadd.f32 %v704, 1e-09
    %v721 = vadd.f32 %v705, 1e-09
    %v722 = vadd.f32 %v706, 1e-09
    %v723 = vadd.f32 %v707, 1e-09
    %v724 = vadd.f32 %v708, 1e-09
    %v725 = vadd.f32 %v709, 1e-09
    %v726 = vadd.f32 %v710, 1e-09
    %v727 = vadd.f32 %v711, 1e-09
    %v728 = vadd.f32 %v712, 1e-09
    %v729 = vadd.f32 %v713, 1e-09
    %v730 = vadd.f32 %v714, 1e-09
    %v731 = vadd.f32 %v715, 1e-09
    %v732 = vlog2.pop %v716
    %v733 = vmul.f32 %v732, 0.6931472
    %v734 = vlog2.pop %v717
    %v735 = vmul.f32 %v734, 0.6931472
    %v736 = vlog2.pop %v718
    %v737 = vmul.f32 %v736, 0.6931472
    %v738 = vlog2.pop %v719
    %v739 = vmul.f32 %v738, 0.6931472
    %v740 = vlog2.pop %v720
    %v741 = vmul.f32 %v740, 0.6931472
    %v742 = vlog2.pop %v721
    %v743 = vmul.f32 %v742, 0.6931472
    %v744 = vlog2.pop %v722
    %v745 = vmul.f32 %v744, 0.6931472
    %v746 = vlog2.pop %v723
    %v747 = vmul.f32 %v746, 0.6931472
    %v748 = vlog2.pop %v724
    %v749 = vmul.f32 %v748, 0.6931472
    %v750 = vlog2.pop %v725
    %v751 = vmul.f32 %v750, 0.6931472
    %v752 = vlog2.pop %v726
    %v753 = vmul.f32 %v752, 0.6931472
    %v754 = vlog2.pop %v727
    %v755 = vmul.f32 %v754, 0.6931472
    %v756 = vlog2.pop %v728
    %v757 = vmul.f32 %v756, 0.6931472
    %v758 = vlog2.pop %v729
    %v759 = vmul.f32 %v758, 0.6931472
    %v760 = vlog2.pop %v730
    %v761 = vmul.f32 %v760, 0.6931472
    %v762 = vlog2.pop %v731
    %v763 = vmul.f32 %v762, 0.6931472
    %v764 = vld [vmem:[#allocation2] sm:$0xff]
    %v765 = vld [vmem:[#allocation2 + $0x8] sm:$0xff]
    %v766 = vld [vmem:[#allocation2 + $0x10] sm:$0xff]
    %v767 = vld [vmem:[#allocation2 + $0x18] sm:$0xff]
    %v768 = vld [vmem:[#allocation2 + $0x20] sm:$0xff]
    %v769 = vld [vmem:[#allocation2 + $0x28] sm:$0xff]
    %v770 = vld [vmem:[#allocation2 + $0x30] sm:$0xff]
    %v771 = vld [vmem:[#allocation2 + $0x38] sm:$0xff]
    %v772 = vld [vmem:[#allocation2 + $0x40] sm:$0xff]
    %v773 = vld [vmem:[#allocation2 + $0x48] sm:$0xff]
    %v774 = vld [vmem:[#allocation2 + $0x50] sm:$0xff]
    %v775 = vld [vmem:[#allocation2 + $0x58] sm:$0xff]
    %v776 = vld [vmem:[#allocation2 + $0x60] sm:$0xff]
    %v777 = vld [vmem:[#allocation2 + $0x68] sm:$0xff]
    %v778 = vld [vmem:[#allocation2 + $0x70] sm:$0xff]
    %v779 = vld [vmem:[#allocation2 + $0x78] sm:$0xff]
    %v780 = vlog2.pop %v764
    %v781 = vmul.f32 %v780, 0.6931472
    %v782 = vlog2.pop %v765
    %v783 = vmul.f32 %v782, 0.6931472
    %v784 = vlog2.pop %v766
    %v785 = vmul.f32 %v784, 0.6931472
    %v786 = vlog2.pop %v767
    %v787 = vmul.f32 %v786, 0.6931472
    %v788 = vlog2.pop %v768
    %v789 = vmul.f32 %v788, 0.6931472
    %v790 = vlog2.pop %v769
    %v791 = vmul.f32 %v790, 0.6931472
    %v792 = vlog2.pop %v770
    %v793 = vmul.f32 %v792, 0.6931472
    %v794 = vlog2.pop %v771
    %v795 = vmul.f32 %v794, 0.6931472
    %v796 = vlog2.pop %v772
    %v797 = vmul.f32 %v796, 0.6931472
    %v798 = vlog2.pop %v773
    %v799 = vmul.f32 %v798, 0.6931472
    %v800 = vlog2.pop %v774
    %v801 = vmul.f32 %v800, 0.6931472
    %v802 = vlog2.pop %v775
    %v803 = vmul.f32 %v802, 0.6931472
    %v804 = vlog2.pop %v776
    %v805 = vmul.f32 %v804, 0.6931472
    %v806 = vlog2.pop %v777
    %v807 = vmul.f32 %v806, 0.6931472
    %v808 = vlog2.pop %v778
    %v809 = vmul.f32 %v808, 0.6931472
    %v810 = vlog2.pop %v779
    %v811 = vmul.f32 %v810, 0.6931472
    %v812 = vsub.f32 %v733, %v781
    %v813 = vsub.f32 %v735, %v783
    %v814 = vsub.f32 %v737, %v785
    %v815 = vsub.f32 %v739, %v787
    %v816 = vsub.f32 %v741, %v789
    %v817 = vsub.f32 %v743, %v791
    %v818 = vsub.f32 %v745, %v793
    %v819 = vsub.f32 %v747, %v795
    %v820 = vsub.f32 %v749, %v797
    %v821 = vsub.f32 %v751, %v799
    %v822 = vsub.f32 %v753, %v801
    %v823 = vsub.f32 %v755, %v803
    %v824 = vsub.f32 %v757, %v805
    %v825 = vsub.f32 %v759, %v807
    %v826 = vsub.f32 %v761, %v809
    %v827 = vsub.f32 %v763, %v811
    %v828 = vsel %vm684, %v812, 0.0
    %v829 = vsel %vm685, %v813, 0.0
    %v830 = vsel %vm686, %v814, 0.0
    %v831 = vsel %vm687, %v815, 0.0
    %v832 = vsel %vm688, %v816, 0.0
    %v833 = vsel %vm689, %v817, 0.0
    %v834 = vsel %vm690, %v818, 0.0
    %v835 = vsel %vm691, %v819, 0.0
    %v836 = vsel %vm692, %v820, 0.0
    %v837 = vsel %vm693, %v821, 0.0
    %v838 = vsel %vm694, %v822, 0.0
    %v839 = vsel %vm695, %v823, 0.0
    %v840 = vsel %vm696, %v824, 0.0
    %v841 = vsel %vm697, %v825, 0.0
    %v842 = vsel %vm698, %v826, 0.0
    %v843 = vsel %vm699, %v827, 0.0
    %844 = vst.msk [vmem:[%s4] sm:$0xff] %vm568, %v828
    %845 = vst.msk [vmem:[%s4 + $0x8] sm:$0xff] %vm568, %v829
    %846 = vst.msk [vmem:[%s4 + $0x10] sm:$0xff] %vm568, %v830
    %847 = vst.msk [vmem:[%s4 + $0x18] sm:$0xff] %vm568, %v831
    %848 = vst.msk [vmem:[%s4 + $0x20] sm:$0xff] %vm568, %v832
    %849 = vst.msk [vmem:[%s4 + $0x28] sm:$0xff] %vm568, %v833
    %850 = vst.msk [vmem:[%s4 + $0x30] sm:$0xff] %vm568, %v834
    %851 = vst.msk [vmem:[%s4 + $0x38] sm:$0xff] %vm568, %v835
    %852 = vst.msk [vmem:[%s4 + $0x40] sm:$0xff] %vm568, %v836
    %853 = vst.msk [vmem:[%s4 + $0x48] sm:$0xff] %vm568, %v837
    %854 = vst.msk [vmem:[%s4 + $0x50] sm:$0xff] %vm568, %v838
    %855 = vst.msk [vmem:[%s4 + $0x58] sm:$0xff] %vm568, %v839
    %856 = vst.msk [vmem:[%s4 + $0x60] sm:$0xff] %vm568, %v840
    %857 = vst.msk [vmem:[%s4 + $0x68] sm:$0xff] %vm568, %v841
    %858 = vst.msk [vmem:[%s4 + $0x70] sm:$0xff] %vm568, %v842
    %859 = vst.msk [vmem:[%s4 + $0x78] sm:$0xff] %vm568, %v843
  $region25: #{soft_nearest_neighbor_loss.1} parent=0 // pred_fallthru
    _
  // Predicated region
  $region26: #{soft_nearest_neighbor_loss.1} parent=0 // pred_check
    _
  $region27: #{soft_nearest_neighbor_loss.1} parent=0 // pred_check_branch
    %861 = sbr.rel (0) target = $region29
  $region28: #{soft_nearest_neighbor_loss.1} parent=0 // pred_region
    _
  $region29: #{soft_nearest_neighbor_loss.1} parent=0 // pred_fallthru
    _
  // Predicated region
  $region30: #{soft_nearest_neighbor_loss.1} parent=0 // pred_check
    _
  $region31: #{soft_nearest_neighbor_loss.1} parent=0 // pred_check_branch
    %863 = sbr.rel (0) target = $region33
  $region32: #{soft_nearest_neighbor_loss.1} parent=0 // pred_region
    _
  $region33: #{soft_nearest_neighbor_loss.1} parent=0 // pred_fallthru
    _

</llo_original>
